<compile_context>
chip_gen: v5e
topology: v5e:2x2
jax: 0.10.0
libtpu: 0.0.40
codegen_flags: <defaults>
</compile_context>

<pallas_src>
import jax
import jax.numpy as jnp
from jax.experimental import pallas as pl
from jax.experimental.pallas import tpu as pltpu


def _mlp_kernel(x_ref, w1_ref, b1_ref, w2_ref, b2_ref, w3_ref, b3_ref, o_ref):
    """One batch tile.  x tile is [TB, F] (natural layout); activations are
    feature-major [features, TB] with the batch on the lane axis."""
    x = x_ref[...].astype(w1_ref.dtype)                            # [TB, F]

    # ---- layer1 + folded batch_norm1: h = W1 @ x^T (contract over F) -> [32, TB]
    h = jax.lax.dot_general(w1_ref[...], x, (((1,), (1,)), ((), ())),
                            preferred_element_type=jnp.float32)
    h = h.astype(b1_ref.dtype) + b1_ref[...]                       # bias add in compute dtype
    h = jnp.maximum(h, 0.1 * h)                                    # LeakyReLU(0.1)
    # dropout1: identity in eval mode

    # ---- layer2 + folded batch_norm2 -> [16, TB]
    h = jnp.dot(w2_ref[...], h, preferred_element_type=jnp.float32)
    h = h.astype(b2_ref.dtype) + b2_ref[...]
    h = jnp.maximum(h, 0.1 * h)                                    # LeakyReLU(0.1)
    # dropout2: identity in eval mode

    # ---- layer3 (16 -> 1) + sigmoid: broadcast-mul + cross-sublane reduce -> [1, TB]
    z = jnp.sum(h.astype(jnp.float32) * w3_ref[...], axis=0, keepdims=True) + b3_ref[...]
    o_ref[...] = jax.nn.sigmoid(z)


def _round_up(n, m):
    return ((n + m - 1) // m) * m


def tennis_predictor_forward(x, params, *, compute_dtype=jnp.bfloat16):
    """Eval-mode forward of TennisPredictor.  x: [B, input_size] f32 -> [B, 1] f32.

    BatchNorm1d uses running statistics (folded into the Linear layers below);
    Dropout is the identity.  Use compute_dtype=jnp.float32 on v5e.
    """
    B, F = x.shape
    eps = 1e-5

    # ---- fold eval-mode BatchNorm into the preceding Linear layers ----
    s1 = params["bn1_gamma"] / jnp.sqrt(params["bn1_var"] + eps)
    t1 = params["bn1_beta"] - params["bn1_mean"] * s1
    s2 = params["bn2_gamma"] / jnp.sqrt(params["bn2_var"] + eps)
    t2 = params["bn2_beta"] - params["bn2_mean"] * s2

    w1 = (params["w1"] * s1[:, None]).astype(compute_dtype)          # [32, F]
    b1 = (params["b1"] * s1 + t1).astype(compute_dtype)[:, None]     # [32, 1]
    w2 = (params["w2"] * s2[:, None]).astype(compute_dtype)          # [16, 32]
    b2 = (params["b2"] * s2 + t2).astype(compute_dtype)[:, None]     # [16, 1]
    w3 = params["w3"].astype(jnp.float32).T                          # [16, 1]
    b3 = params["b3"].astype(jnp.float32)[:, None]                   # [1, 1]
    h1, h2 = w1.shape[0], w2.shape[0]

    # ---- batch tile: lane-aligned, as large as is useful ----
    # x tile is tb*F*4 bytes (1 MiB at tb=16384, F=16) so double-buffering is
    # cheap on every generation; keep >= 2 tiles for larger B so the
    # ("parallel",) batch axis can split across v7x's two TensorCores.
    TB_CAP = 16384
    if B <= 256:
        tb = _round_up(B, 128)
    else:
        tb = min(_round_up(pl.cdiv(B, 2), 128), TB_CAP)
    n_tiles = pl.cdiv(B, tb)
    b_pad = n_tiles * tb     # output padded -> every output store is a full [1, tb] block

    cost = pl.CostEstimate(
        flops=2 * B * (F * h1 + h1 * h2 + h2),
        transcendentals=B,
        bytes_accessed=int(
            x.size * x.dtype.itemsize
            + b_pad * 4
            + sum(a.size * a.dtype.itemsize for a in (w1, b1, w2, b2, w3, b3))
        ),
    )

    out = pl.pallas_call(
        _mlp_kernel,
        out_shape=jax.ShapeDtypeStruct((1, b_pad), jnp.float32),
        grid=(n_tiles,),
        in_specs=[
            # x tile, natural [B, F] layout, streamed / double-buffered.
            # (If profiling shows exposed input DMA, add pipeline_mode=pl.Buffered(3).)
            pl.BlockSpec((tb, F), lambda i: (i, 0)),
            pl.BlockSpec((h1, F), lambda i: (0, 0)),      # w1: VMEM-resident
            pl.BlockSpec((h1, 1), lambda i: (0, 0)),      # b1
            pl.BlockSpec((h2, h1), lambda i: (0, 0)),     # w2
            pl.BlockSpec((h2, 1), lambda i: (0, 0)),      # b2
            pl.BlockSpec((h2, 1), lambda i: (0, 0)),      # w3
            pl.BlockSpec((1, 1), lambda i: (0, 0)),       # b3
        ],
        out_specs=pl.BlockSpec((1, tb), lambda i: (0, i)),  # lane-dense output slab
        compiler_params=pltpu.CompilerParams(
            dimension_semantics=("parallel",),
            vmem_limit_bytes=48 << 20,
        ),
        cost_estimate=cost,
    )(x, w1, b1, w2, b2, w3, b3)

    return out[0, :B][:, None]                              # back to [B, 1]


def init_params(key, input_size):
    """Deterministic synthetic parameters matching TennisPredictor.__init__ shapes."""
    ks = jax.random.split(key, 10)
    return {
        # nn.Linear(input_size, 32): weight [32, input_size], bias [32]
        "w1": 0.1 * jax.random.normal(ks[0], (32, input_size), jnp.float32),
        "b1": 0.1 * jax.random.normal(ks[1], (32,), jnp.float32),
        # nn.BatchNorm1d(32)
        "bn1_gamma": 1.0 + 0.1 * jax.random.normal(ks[2], (32,), jnp.float32),
        "bn1_beta": 0.1 * jax.random.normal(ks[3], (32,), jnp.float32),
        "bn1_mean": 0.1 * jax.random.normal(ks[4], (32,), jnp.float32),
        "bn1_var": jnp.abs(1.0 + 0.1 * jax.random.normal(ks[5], (32,), jnp.float32)),
        # nn.Linear(32, 16)
        "w2": 0.1 * jax.random.normal(ks[6], (16, 32), jnp.float32),
        "b2": 0.1 * jax.random.normal(ks[7], (16,), jnp.float32),
        # nn.BatchNorm1d(16)
        "bn2_gamma": jnp.ones((16,), jnp.float32),
        "bn2_beta": jnp.zeros((16,), jnp.float32),
        "bn2_mean": jnp.zeros((16,), jnp.float32),
        "bn2_var": jnp.ones((16,), jnp.float32),
        # nn.Linear(16, 1)
        "w3": 0.1 * jax.random.normal(ks[8], (1, 16), jnp.float32),
        "b3": 0.1 * jax.random.normal(ks[9], (1,), jnp.float32),
    }


def reference_forward(x, params):
    """Pure-JAX f32 reference (eval-mode semantics) for correctness check."""
    eps = 1e-5
    h = x @ params["w1"].T + params["b1"]
    h = (h - params["bn1_mean"]) / jnp.sqrt(params["bn1_var"] + eps)
    h = h * params["bn1_gamma"] + params["bn1_beta"]
    h = jnp.where(h > 0, h, 0.1 * h)
    h = h @ params["w2"].T + params["b2"]
    h = (h - params["bn2_mean"]) / jnp.sqrt(params["bn2_var"] + eps)
    h = h * params["bn2_gamma"] + params["bn2_beta"]
    h = jnp.where(h > 0, h, 0.1 * h)
    h = h @ params["w3"].T + params["b3"]
    return jax.nn.sigmoid(h)


if __name__ == "__main__":
    key = jax.random.PRNGKey(0)
    k_param, k_x, k_x2 = jax.random.split(key, 3)

    input_size = 16
    params = init_params(k_param, input_size)

    # Small batch: single grid step, partial (clamped) input block.
    batch = 8
    x = jax.random.normal(k_x, (batch, input_size), jnp.float32)
    ref = reference_forward(x, params)

    # f32 compute path: tight check (only BN folding rearranges the math).
    out_f32 = jax.block_until_ready(
        tennis_predictor_forward(x, params, compute_dtype=jnp.float32))
    assert out_f32.shape == (batch, 1)
    assert jnp.allclose(out_f32, ref, atol=1e-5, rtol=1e-5), (out_f32, ref)

    # bf16 compute path (default, MXU/VALU-friendly on v6e/v7x): looser tolerance.
    out_bf16 = jax.block_until_ready(tennis_predictor_forward(x, params))
    assert out_bf16.shape == (batch, 1)
    assert jnp.allclose(out_bf16, ref, atol=3e-2, rtol=3e-2), (out_bf16, ref)

    # Multi-tile batch: 2 grid steps, partial last input block.
    x2 = jax.random.normal(k_x2, (300, input_size), jnp.float32)
    ref2 = reference_forward(x2, params)
    out2 = jax.block_until_ready(
        tennis_predictor_forward(x2, params, compute_dtype=jnp.float32))
    assert out2.shape == (300, 1)
    assert jnp.allclose(out2, ref2, atol=1e-5, rtol=1e-5), (out2, ref2)

    print("KERNEL_OK")
</pallas_src>

<mosaic_0001>
module attributes {stable_mosaic.version = 11 : i64} {
  func.func @_mlp_kernel(%arg0: i32, %arg1: memref<128x16xf32, #tpu.memory_space<vmem>>, %arg2: memref<32x16xf32, #tpu.memory_space<vmem>>, %arg3: memref<32x1xf32, #tpu.memory_space<vmem>>, %arg4: memref<16x32xf32, #tpu.memory_space<vmem>>, %arg5: memref<16x1xf32, #tpu.memory_space<vmem>>, %arg6: memref<16x1xf32, #tpu.memory_space<vmem>>, %arg7: memref<1x1xf32, #tpu.memory_space<vmem>>, %arg8: memref<1x128xf32, #tpu.memory_space<vmem>>) attributes {dimension_semantics = [#tpu.dimension_semantics<parallel>], iteration_bounds = array<i64: 1>, scalar_prefetch = 0 : i64, scratch_operands = 0 : i64, tpu.core_type = #tpu.core_type<tc>, window_params = [{transform_indices = @transform_0, window_bounds = array<i64: 128, 16>}, {pipeline_mode = #tpu.pipeline_mode<synchronous>, transform_indices = @transform_1, window_bounds = array<i64: 32, 16>}, {pipeline_mode = #tpu.pipeline_mode<synchronous>, transform_indices = @transform_2, window_bounds = array<i64: 32, 1>}, {pipeline_mode = #tpu.pipeline_mode<synchronous>, transform_indices = @transform_3, window_bounds = array<i64: 16, 32>}, {pipeline_mode = #tpu.pipeline_mode<synchronous>, transform_indices = @transform_4, window_bounds = array<i64: 16, 1>}, {pipeline_mode = #tpu.pipeline_mode<synchronous>, transform_indices = @transform_5, window_bounds = array<i64: 16, 1>}, {pipeline_mode = #tpu.pipeline_mode<synchronous>, transform_indices = @transform_6, window_bounds = array<i64: 1, 1>}, {transform_indices = @transform_7, window_bounds = array<i64: 1, 128>}]} {
    %c0 = arith.constant 0 : index
    %c0_0 = arith.constant 0 : index
    %0 = vector.load %arg1[%c0, %c0_0] : memref<128x16xf32, #tpu.memory_space<vmem>>, vector<128x16xf32>
    %c0_1 = arith.constant 0 : index
    %c0_2 = arith.constant 0 : index
    %1 = vector.load %arg2[%c0_1, %c0_2] : memref<32x16xf32, #tpu.memory_space<vmem>>, vector<32x16xf32>
    %cst = arith.constant dense<0.000000e+00> : vector<32x128xf32>
    %2 = tpu.matmul %1, %0, %cst {dimension_numbers = #tpu.dot_dimension_numbers<[1], [1], [0], [0], [0, 0, 1, 0], [], []>} : vector<32x16xf32>, vector<128x16xf32>, vector<32x128xf32> -> vector<32x128xf32>
    %c0_3 = arith.constant 0 : index
    %c0_4 = arith.constant 0 : index
    %3 = vector.load %arg3[%c0_3, %c0_4] : memref<32x1xf32, #tpu.memory_space<vmem>>, vector<32x1xf32>
    %4 = vector.broadcast %3 : vector<32x1xf32> to vector<32x128xf32>
    %5 = arith.addf %2, %4 : vector<32x128xf32>
    %cst_5 = arith.constant 1.000000e-01 : f32
    %6 = vector.broadcast %cst_5 : f32 to vector<32x128xf32>
    %7 = arith.mulf %6, %5 : vector<32x128xf32>
    %8 = arith.maximumf %5, %7 : vector<32x128xf32>
    %c0_6 = arith.constant 0 : index
    %c0_7 = arith.constant 0 : index
    %9 = vector.load %arg4[%c0_6, %c0_7] : memref<16x32xf32, #tpu.memory_space<vmem>>, vector<16x32xf32>
    %cst_8 = arith.constant dense<0.000000e+00> : vector<16x128xf32>
    %10 = tpu.matmul %9, %8, %cst_8 {dimension_numbers = #tpu.dot_dimension_numbers<[1], [0], [0], [1], [0, 0, 1, 1], [], []>} : vector<16x32xf32>, vector<32x128xf32>, vector<16x128xf32> -> vector<16x128xf32>
    %c0_9 = arith.constant 0 : index
    %c0_10 = arith.constant 0 : index
    %11 = vector.load %arg5[%c0_9, %c0_10] : memref<16x1xf32, #tpu.memory_space<vmem>>, vector<16x1xf32>
    %12 = vector.broadcast %11 : vector<16x1xf32> to vector<16x128xf32>
    %13 = arith.addf %10, %12 : vector<16x128xf32>
    %cst_11 = arith.constant 1.000000e-01 : f32
    %14 = vector.broadcast %cst_11 : f32 to vector<16x128xf32>
    %15 = arith.mulf %14, %13 : vector<16x128xf32>
    %16 = arith.maximumf %13, %15 : vector<16x128xf32>
    %c0_12 = arith.constant 0 : index
    %c0_13 = arith.constant 0 : index
    %17 = vector.load %arg6[%c0_12, %c0_13] : memref<16x1xf32, #tpu.memory_space<vmem>>, vector<16x1xf32>
    %18 = vector.broadcast %17 : vector<16x1xf32> to vector<16x128xf32>
    %19 = arith.mulf %16, %18 : vector<16x128xf32>
    %cst_14 = arith.constant dense<0.000000e+00> : vector<128xf32>
    %20 = vector.multi_reduction <add>, %19, %cst_14 [0] : vector<16x128xf32> to vector<128xf32>
    %21 = vector.shape_cast %20 : vector<128xf32> to vector<1x128xf32>
    %c0_15 = arith.constant 0 : index
    %c0_16 = arith.constant 0 : index
    %22 = vector.load %arg7[%c0_15, %c0_16] : memref<1x1xf32, #tpu.memory_space<vmem>>, vector<1x1xf32>
    %23 = vector.broadcast %22 : vector<1x1xf32> to vector<1x128xf32>
    %24 = arith.addf %21, %23 : vector<1x128xf32>
    %25 = arith.negf %24 : vector<1x128xf32>
    %26 = math.exp %25 : vector<1x128xf32>
    %cst_17 = arith.constant 1.000000e+00 : f32
    %27 = vector.broadcast %cst_17 : f32 to vector<1x128xf32>
    %28 = arith.addf %27, %26 : vector<1x128xf32>
    %29 = arith.divf %27, %28 : vector<1x128xf32>
    %c0_18 = arith.constant 0 : index
    %c0_19 = arith.constant 0 : index
    %30 = vector.load %arg8[%c0_18, %c0_19] : memref<1x128xf32, #tpu.memory_space<vmem>>, vector<1x128xf32>
    tpu.vector_store %arg8[%c0_18, %c0_19], %29 {strides = array<i32>} : memref<1x128xf32, #tpu.memory_space<vmem>>, vector<1x128xf32>,
    return
  }
  func.func @transform_0(%arg0: i32) -> (i32, i32) {
    %c0_i32 = arith.constant 0 : i32
    %c0_i32_0 = arith.constant 0 : i32
    return %arg0, %c0_i32 : i32, i32
  }
  func.func @transform_1(%arg0: i32) -> (i32, i32) {
    %c0_i32 = arith.constant 0 : i32
    %c0_i32_0 = arith.constant 0 : i32
    %c0_i32_1 = arith.constant 0 : i32
    return %c0_i32, %c0_i32_0 : i32, i32
  }
  func.func @transform_2(%arg0: i32) -> (i32, i32) {
    %c0_i32 = arith.constant 0 : i32
    %c0_i32_0 = arith.constant 0 : i32
    %c0_i32_1 = arith.constant 0 : i32
    return %c0_i32, %c0_i32_0 : i32, i32
  }
  func.func @transform_3(%arg0: i32) -> (i32, i32) {
    %c0_i32 = arith.constant 0 : i32
    %c0_i32_0 = arith.constant 0 : i32
    %c0_i32_1 = arith.constant 0 : i32
    return %c0_i32, %c0_i32_0 : i32, i32
  }
  func.func @transform_4(%arg0: i32) -> (i32, i32) {
    %c0_i32 = arith.constant 0 : i32
    %c0_i32_0 = arith.constant 0 : i32
    %c0_i32_1 = arith.constant 0 : i32
    return %c0_i32, %c0_i32_0 : i32, i32
  }
  func.func @transform_5(%arg0: i32) -> (i32, i32) {
    %c0_i32 = arith.constant 0 : i32
    %c0_i32_0 = arith.constant 0 : i32
    %c0_i32_1 = arith.constant 0 : i32
    return %c0_i32, %c0_i32_0 : i32, i32
  }
  func.func @transform_6(%arg0: i32) -> (i32, i32) {
    %c0_i32 = arith.constant 0 : i32
    %c0_i32_0 = arith.constant 0 : i32
    %c0_i32_1 = arith.constant 0 : i32
    return %c0_i32, %c0_i32_0 : i32, i32
  }
  func.func @transform_7(%arg0: i32) -> (i32, i32) {
    %c0_i32 = arith.constant 0 : i32
    %c0_i32_0 = arith.constant 0 : i32
    return %c0_i32, %arg0 : i32, i32
  }
}

</mosaic_0001>

<llo_original>
// kernel: tpu_custom_call.1
$region0: #{tpu_custom_call.1}
  #allocation0 [shape = 'u32[]', space=smem, size = 0x4, offset = 0x4, fixed_abs, tag = 'smem constant byte address 0x4 - core index']
  #allocation1 [shape = 'u32[72,128]{1,0:T(1,128)}', space=vmem, size = 0x9000, scoped, tag = 'internal scratch']
  #allocation2 [shape = 'f32[1,1]{1,0:T(1,128)S(1)}', space=vmem, size = 0x200, scoped, tag = 'scoped memory for tpu_custom_call.1']
  %s0 = inlined_call_operand.vmem [shape: f32[8,16], index: 0, kind: input, shape index: {}]
  %s1 = inlined_call_operand.vmem [shape: f32[32,16], index: 1, kind: input, shape index: {}]
  %s2 = inlined_call_operand.vmem [shape: f32[32,1], index: 2, kind: input, shape index: {}]
  %s3 = inlined_call_operand.vmem [shape: f32[16,32], index: 3, kind: input, shape index: {}]
  %s4 = inlined_call_operand.vmem [shape: f32[16,1], index: 4, kind: input, shape index: {}]
  %s5 = inlined_call_operand.vmem [shape: f32[16,1], index: 5, kind: input, shape index: {}]
  %s6 = inlined_call_operand.<no memory space> [shape: f32[1,1], index: 6, kind: input, shape index: {}]
  %s7 = inlined_call_operand.hbm [shape: f32[1,128], index: 7, kind: output, shape index: {}]
  %s8 = sld [smem:[#allocation0]]
  $region38: #{tpu_custom_call.1} parent=0
    _
  %s10 = ssub.s32 1, %s8
  %s11 = scalar_select 0, %s10, %s8
  %v12 = vstv %s6
  %13 = vst [vmem:[#allocation2] sm:$0x1] %v12
  $region1: #{tpu_custom_call.1} parent=0
    #allocation3 [shape = 'u8[512]{0}', space=vmem, size = 0x400, scoped, tag = 'output window, operand 0, single buffered']
    #allocation4 [shape = 's32[1]{0}', space=sflag, size = 0x4, scoped, tag = 'scoped memory for tpu_custom_call.1']
    %14 = vsyncpa [#allocation4], 0
    // Predicated region
    $region2: #{tpu_custom_call.1} parent=1 // pred_check
      _
    $region3: #{tpu_custom_call.1} parent=1 // pred_check_branch
      %16 = sbr.rel (0) target = $region5
    $region4: #{tpu_custom_call.1} parent=1 // pred_region
      _
    $region5: #{tpu_custom_call.1} parent=1 // pred_fallthru
      _
    // Predicated region
    $region6: #{tpu_custom_call.1} parent=1 // pred_check
      _
    $region7: #{tpu_custom_call.1} parent=1 // pred_check_branch
      %18 = sbr.rel (0) target = $region9
    $region8: #{tpu_custom_call.1} parent=1 // pred_region
      _
    $region9: #{tpu_custom_call.1} parent=1 // pred_fallthru
      _
    // Predicated region
    $region10: #{tpu_custom_call.1} parent=1 // pred_check
      _
    $region11: #{tpu_custom_call.1} parent=1 // pred_check_branch
      %20 = sbr.rel (0) target = $region13
    $region12: #{tpu_custom_call.1} parent=1 // pred_region
      _
    $region13: #{tpu_custom_call.1} parent=1 // pred_fallthru
      _
    // Predicated region
    $region14: #{tpu_custom_call.1} parent=1 // pred_check
      _
    $region15: #{tpu_custom_call.1} parent=1 // pred_check_branch
      %22 = sbr.rel (0) target = $region17
    $region16: #{tpu_custom_call.1} parent=1 // pred_region
      _
    $region17: #{tpu_custom_call.1} parent=1 // pred_fallthru
      _
    // Predicated region
    $region18: #{tpu_custom_call.1} parent=1 // pred_check
      _
    $region19: #{tpu_custom_call.1} parent=1 // pred_check_branch
      %24 = sbr.rel (0) target = $region21
    $region20: #{tpu_custom_call.1} parent=1 // pred_region
      _
    $region21: #{tpu_custom_call.1} parent=1 // pred_fallthru
      _
    // Predicated region
    $region22: #{tpu_custom_call.1} parent=1 // pred_check
      _
    $region23: #{tpu_custom_call.1} parent=1 // pred_check_branch
      %26 = sbr.rel (0) target = $region25
    $region24: #{tpu_custom_call.1} parent=1 // pred_region
      _
    $region25: #{tpu_custom_call.1} parent=1 // pred_fallthru
      _
    // Predicated region
    $region26: #{tpu_custom_call.1} parent=1 // pred_check
      _
    $region27: #{tpu_custom_call.1} parent=1 // pred_check_branch
      %28 = sbr.rel (0) target = $region29
    $region28: #{tpu_custom_call.1} parent=1 // pred_region
      _
    $region29: #{tpu_custom_call.1} parent=1 // pred_fallthru
      _
    %v29 = vld [vmem:[%s0] sm:$0xff]
    %v30 = vld [vmem:[%s0 + $0x8] sm:$0xff]
    %v31 = vld [vmem:[%s0 + $0x10] sm:$0xff]
    %v32 = vld [vmem:[%s0 + $0x18] sm:$0xff]
    %v33 = vld [vmem:[%s0 + $0x20] sm:$0xff]
    %v34 = vld [vmem:[%s0 + $0x28] sm:$0xff]
    %v35 = vld [vmem:[%s0 + $0x30] sm:$0xff]
    %v36 = vld [vmem:[%s0 + $0x38] sm:$0xff]
    %v37 = vld [vmem:[%s0 + $0x40] sm:$0xff]
    %v38 = vld [vmem:[%s0 + $0x48] sm:$0xff]
    %v39 = vld [vmem:[%s0 + $0x50] sm:$0xff]
    %v40 = vld [vmem:[%s0 + $0x58] sm:$0xff]
    %v41 = vld [vmem:[%s0 + $0x60] sm:$0xff]
    %v42 = vld [vmem:[%s0 + $0x68] sm:$0xff]
    %v43 = vld [vmem:[%s0 + $0x70] sm:$0xff]
    %v44 = vld [vmem:[%s0 + $0x78] sm:$0xff]
    %v45 = vld [vmem:[%s1] sm:$0xff]
    %v46 = vld [vmem:[%s1 + $0x8] sm:$0xff]
    %v47 = vld [vmem:[%s1 + $0x10] sm:$0xff]
    %v48 = vld [vmem:[%s1 + $0x18] sm:$0xff]
    %v49 = vld [vmem:[%s2] sm:$0xff]
    %v50 = vld [vmem:[%s2 + $0x8] sm:$0xff]
    %v51 = vld [vmem:[%s2 + $0x10] sm:$0xff]
    %v52 = vld [vmem:[%s2 + $0x18] sm:$0xff]
    %54 = vset.pattern.permute.xlu0 0
    %55 = vperm.xlu0 %54, %v49
    %v56 = vpop.permute.xlu0 %55
    %59 = vset.pattern.permute.xlu0 0
    %60 = vperm.xlu0 %59, %v50
    %v61 = vpop.permute.xlu0 %60
    %64 = vset.pattern.permute.xlu0 0
    %65 = vperm.xlu0 %64, %v51
    %v66 = vpop.permute.xlu0 %65
    %69 = vset.pattern.permute.xlu0 0
    %70 = vperm.xlu0 %69, %v52
    %v71 = vpop.permute.xlu0 %70
    %vm73 = vcmask 130048
    %v75 = vsel %vm73, %v45, 0
    %v78 = vsel %vm73, %v46, 0
    %v81 = vsel %vm73, %v47, 0
    %v84 = vsel %vm73, %v48, 0
    %v87 = vsel %vm73, %v29, 0
    %v90 = vsel %vm73, %v30, 0
    %v93 = vsel %vm73, %v31, 0
    %v96 = vsel %vm73, %v32, 0
    %v99 = vsel %vm73, %v33, 0
    %v102 = vsel %vm73, %v34, 0
    %v105 = vsel %vm73, %v35, 0
    %v108 = vsel %vm73, %v36, 0
    %v111 = vsel %vm73, %v37, 0
    %v114 = vsel %vm73, %v38, 0
    %v117 = vsel %vm73, %v39, 0
    %v120 = vsel %vm73, %v40, 0
    %v123 = vsel %vm73, %v41, 0
    %v126 = vsel %vm73, %v42, 0
    %v129 = vsel %vm73, %v43, 0
    %v132 = vsel %vm73, %v44, 0
    %134 = vmatpush.xpose.msra.mxu0 %v132
    %135 = vmatpush.xpose.msra.mxu0 %v129
    %136 = vmatpush.xpose.msra.mxu0 %v126
    %137 = vmatpush.xpose.msra.mxu0 %v123
    %138 = vmatpush.xpose.msra.mxu0 %v120
    %139 = vmatpush.xpose.msra.mxu0 %v117
    %140 = vmatpush.xpose.msra.mxu0 %v114
    %141 = vmatpush.xpose.msra.mxu0 %v111
    %142 = vmatpush.xpose.msra.mxu0 %v108
    %143 = vmatpush.xpose.msra.mxu0 %v105
    %144 = vmatpush.xpose.msra.mxu0 %v102
    %145 = vmatpush.xpose.msra.mxu0 %v99
    %146 = vmatpush.xpose.msra.mxu0 %v96
    %147 = vmatpush.xpose.msra.mxu0 %v93
    %148 = vmatpush.xpose.msra.mxu0 %v90
    %149 = vmatpush.xpose.msra.mxu0 %v87
    %150 = vmatmul.f32.gmra.mxu0 %v75
    %v151 = vpop.f32.mrf.mxu0
    %v152 = vadd.f32 %v56, %v151
    %153 = vmatmul.f32.gmra.mxu0 %v78
    %v154 = vpop.f32.mrf.mxu0
    %v155 = vadd.f32 %v61, %v154
    %156 = vmatmul.f32.gmra.mxu0 %v81
    %v157 = vpop.f32.mrf.mxu0
    %v158 = vadd.f32 %v66, %v157
    %159 = vmatmul.f32.gmra.mxu0 %v84
    %v160 = vpop.f32.mrf.mxu0
    %v161 = vadd.f32 %v71, %v160
    %162 = vdwg.mxu0
    %v163 = vmul.f32 %v152, 0.1
    %v164 = vmul.f32 %v155, 0.1
    %v165 = vmul.f32 %v158, 0.1
    %v166 = vmul.f32 %v161, 0.1
    %v167 = vmax.f32 %v152, %v163
    %v168 = vmax.f32 %v155, %v164
    %v169 = vmax.f32 %v158, %v165
    %v170 = vmax.f32 %v161, %v166
    %v171 = vld [vmem:[%s3] sm:$0xff]
    %v172 = vld [vmem:[%s3 + $0x8] sm:$0xff]
    %v173 = vld [vmem:[%s4] sm:$0xff]
    %v174 = vld [vmem:[%s4 + $0x8] sm:$0xff]
    %176 = vset.pattern.permute.xlu0 0
    %177 = vperm.xlu0 %176, %v173
    %v178 = vpop.permute.xlu0 %177
    %181 = vset.pattern.permute.xlu0 0
    %182 = vperm.xlu0 %181, %v174
    %v183 = vpop.permute.xlu0 %182
    %vm185 = vcmask 261120
    %v187 = vsel %vm185, %v171, 0
    %v190 = vsel %vm185, %v172, 0
    %192 = vmatpush.msra.mxu0 0.0
    %193 = vmatpush.msra.mxu0 0.0
    %194 = vmatpush.msra.mxu0 0.0
    %195 = vmatpush.msra.mxu0 0.0
    %196 = vmatpush.msra.mxu0 0.0
    %197 = vmatpush.msra.mxu0 0.0
    %198 = vmatpush.msra.mxu0 0.0
    %199 = vmatpush.msra.mxu0 0.0
    %200 = vmatpush.msra.mxu0 0.0
    %201 = vmatpush.msra.mxu0 0.0
    %202 = vmatpush.msra.mxu0 0.0
    %203 = vmatpush.msra.mxu0 0.0
    %204 = vmatpush.msra.mxu0 %v170
    %205 = vmatpush.msra.mxu0 %v169
    %206 = vmatpush.msra.mxu0 %v168
    %207 = vmatpush.msra.mxu0 %v167
    %208 = vmatmul.f32.gmra.mxu0 %v187
    %v209 = vpop.f32.mrf.mxu0
    %v210 = vadd.f32 %v178, %v209
    %211 = vmatmul.f32.gmra.mxu0 %v190
    %v212 = vpop.f32.mrf.mxu0
    %v213 = vadd.f32 %v183, %v212
    %214 = vdwg.mxu0
    %v215 = vmul.f32 %v210, 0.1
    %v216 = vmul.f32 %v213, 0.1
    %v217 = vmax.f32 %v210, %v215
    %v218 = vmax.f32 %v213, %v216
    %v219 = vld [vmem:[%s5] sm:$0xff]
    %v220 = vld [vmem:[%s5 + $0x8] sm:$0xff]
    %222 = vset.pattern.permute.xlu0 0
    %223 = vperm.xlu0 %222, %v219
    %v224 = vpop.permute.xlu0 %223
    %227 = vset.pattern.permute.xlu0 0
    %228 = vperm.xlu0 %227, %v220
    %v229 = vpop.permute.xlu0 %228
    %v231 = vmul.f32 %v217, %v224
    %v232 = vmul.f32 %v218, %v229
    %v233 = vadd.f32 %v231, %v232
    %v234 = vrot.slane %v233, 4
    %v235 = vadd.f32 %v233, %v234
    %v236 = vrot.slane %v235, 2
    %v237 = vadd.f32 %v235, %v236
    %v238 = vrot.slane %v237, 1
    %v239 = vadd.f32 %v237, %v238
    %v240 = vld [vmem:[#allocation2] sm:$0x1]
    %242 = vset.pattern.permute.xlu0 0
    %243 = vperm.xlu0 %242, %v240
    %v244 = vpop.permute.xlu0 %243
    %v246 = vperm.slane %v244, 0
    %v247 = vadd.f32 %v239, %v246
    %v248 = vxor.u32 %v247, 2147483648
    %v249 = vmul.f32 %v248, 1.442695
    %v250 = vpow.pop %v249
    %v251 = vadd.f32 %v250, 1.0
    %v252 = vrcp.pop %v251
    %v253 = vmul.f32 %v251, %v252
    %v254 = vsub.f32 1.0, %v253
    %v255 = vmul.f32 %v252, %v254
    %v256 = vadd.f32 %v252, %v255
    %vm257 = vweird.f32 %v251
    %vm258 = vweird.f32 %v252
    %vm259 = vmor %vm257, %vm258
    %v260 = vsel %vm259, %v252, %v256
    %v261 = vand.u32 2147483647, %v251
    %vm262 = vcmp.eq.f32.partialorder %v261, 8.507059e+37
    %v263 = vand.u32 %v251, 2147483648
    %v264 = vor.u32 1.1754944e-38, %v263
    %v265 = vsel %vm262, %v264, %v260
    %v266 = vmul.f32 1.0, %v265
    %267 = vst [vmem:[#allocation3] sm:$0x1] %v266
    // Predicated region
    $region30: #{tpu_custom_call.1} parent=1 // pred_check
      _
    $region31: #{tpu_custom_call.1} parent=1 // pred_check_branch
      %269 = sbr.rel (0) target = $region33
    $region32: #{tpu_custom_call.1} parent=1 // pred_region
      %271 = vsyncadd [#allocation4], 0
      %s273 = sshll.u32 [#allocation3], 4
      %s274 = int_to_ptr.vmem [resolvable:$true] %s273
      %s275 = sshll.u32 %s7, 4
      %s276 = int_to_ptr.hbm [resolvable:$true] %s275
      %278 = dma.vmem_to_hbm [thread:$0]  %s274, 16, %s276, [#allocation4]
    $region33: #{tpu_custom_call.1} parent=1 // pred_fallthru
      _
    // Predicated region
    $region34: #{tpu_custom_call.1} parent=1 // pred_check
      _
    $region35: #{tpu_custom_call.1} parent=1 // pred_check_branch
      %280 = sbr.rel (0) target = $region37
    $region36: #{tpu_custom_call.1} parent=1 // pred_region
      %282 = dma.done [#allocation4], 16
    $region37: #{tpu_custom_call.1} parent=1 // pred_fallthru
      _
    %283 = vsyncpa [#allocation4], 1

</llo_original>
